<compile_context>
chip_gen: v7x
topology: tpu7x:2x2x1
jax: 0.10.0
libtpu: 0.0.40
codegen_flags: <defaults>
</compile_context>

<pallas_src>
import functools

import numpy as np
import jax
import jax.numpy as jnp
from jax.experimental import pallas as pl
from jax.experimental.pallas import tpu as pltpu


_PER_STAGE_BYTES = 12 * 1024 * 1024   # one pipeline stage, 3 inputs together
_VMEM_LIMIT_BYTES = 48 * 1024 * 1024  # < v7x 64 MiB physical, > v5e 16 MiB default


def _cdiv(a, b):
    return -(-a // b)


def _smape_partial_kernel(f_ref, t_ref, m_ref, out_ref):
    """Per-block partial sums of divide_no_nan(|f-t|, |f|+|t|) * mask."""
    f = f_ref[...].astype(jnp.float32)
    t = t_ref[...].astype(jnp.float32)
    m = m_ref[...].astype(jnp.float32)

    num = jnp.abs(f - t)
    den = jnp.abs(f) + jnp.abs(t)
    # divide_no_nan: 0/0 (NaN) and x/0 (Inf) both become 0.  num <= den for
    # finite inputs, so there is no other Inf source; exact divide is free
    # under the HBM stream.
    safe_den = jnp.where(den > 0.0, den, 1.0)
    ratio = jnp.where(den > 0.0, num / safe_den, 0.0)
    term = ratio * m                                   # (tb, L)

    rowsum = jnp.sum(term, axis=0, keepdims=True)      # (1, L) sublane reduce
    # Write the same lane-partial row to all 8 sublanes of this step's output
    # block (keeps the block (8, L)-aligned); the wrapper divides by 8.
    out_ref[...] = jnp.broadcast_to(rowsum, out_ref.shape)


def _tiling(n_elems, itemsize_sum, per_stage_bytes):
    """Choose lane width L, row tile tb, padded rows and grid size."""
    lane = 512 if n_elems >= 4096 else 128             # lane-dense last dim
    rows_needed = max(1, _cdiv(n_elems, lane))
    budget_rows = max(8, (per_stage_bytes // (lane * itemsize_sum)) // 8 * 8)
    if rows_needed <= budget_rows:
        tb = max(8, _cdiv(rows_needed, 8) * 8)
    else:
        tb = budget_rows
    g = _cdiv(rows_needed, tb)
    rows = g * tb
    return lane, tb, rows, g


def _as_tiles(x, n, rows, lane):
    """Flatten to 1-D, zero-pad to rows*lane, view as (rows, lane).  Keeps dtype."""
    flat = x.reshape(-1)
    total = rows * lane
    if total != n:
        flat = jnp.pad(flat, (0, total - n))           # zeros -> contribute 0
    return flat.reshape(rows, lane)


def _smape_pallas(forecast, target, mask, *, per_stage_bytes=_PER_STAGE_BYTES):
    assert forecast.shape == target.shape == mask.shape, "shape mismatch"
    n = int(np.prod(forecast.shape))

    isum = (jnp.dtype(forecast.dtype).itemsize
            + jnp.dtype(target.dtype).itemsize
            + jnp.dtype(mask.dtype).itemsize)
    lane, tb, rows, g = _tiling(n, isum, per_stage_bytes)

    f2 = _as_tiles(forecast, n, rows, lane)
    t2 = _as_tiles(target, n, rows, lane)
    m2 = _as_tiles(mask, n, rows, lane)

    total_padded = rows * lane
    in_bytes = total_padded * isum
    out_bytes = g * 8 * lane * 4

    partials = pl.pallas_call(
        _smape_partial_kernel,
        out_shape=jax.ShapeDtypeStruct((g * 8, lane), jnp.float32),
        grid_spec=pltpu.PrefetchScalarGridSpec(
            num_scalar_prefetch=0,
            grid=(g,),
            in_specs=[pl.BlockSpec((tb, lane), lambda i: (i, 0))
                      for _ in range(3)],
            out_specs=pl.BlockSpec((8, lane), lambda i: (i, 0)),
        ),
        compiler_params=pltpu.CompilerParams(
            dimension_semantics=("parallel",),
            vmem_limit_bytes=_VMEM_LIMIT_BYTES),
        cost_estimate=pl.CostEstimate(
            flops=int(8 * total_padded),
            transcendentals=int(total_padded),
            bytes_accessed=int(in_bytes + out_bytes)),
    )(f2, t2, m2)

    # Each output block holds 8 identical lane-partial rows -> divide by 8.
    return partials.sum() * (200.0 / (8.0 * n))


@functools.partial(jax.jit, static_argnames=("freq",))
def smape_loss(insample, freq, forecast, target, mask):
    """sMAPE loss. `insample` and `freq` are unused, as in the PyTorch module."""
    del insample, freq
    return _smape_pallas(forecast, target, mask)


def _smape_ref(forecast, target, mask):
    f = forecast.astype(jnp.float32)
    t = target.astype(jnp.float32)
    m = mask.astype(jnp.float32)
    num = jnp.abs(f - t)
    den = jnp.abs(f) + jnp.abs(t)
    r = num / den
    r = jnp.where(jnp.isnan(r) | jnp.isinf(r), 0.0, r)
    return 200.0 * jnp.mean(r * m)


if __name__ == "__main__":
    key = jax.random.PRNGKey(0)
    k1, k2, k3, k4 = jax.random.split(key, 4)

    # --- small case matching the module contract: (batch, time) ---
    B, T = 4, 24
    INS = 48
    forecast = jax.random.normal(k1, (B, T), jnp.float32)
    target = jax.random.normal(k2, (B, T), jnp.float32)
    mask = (jax.random.uniform(k3, (B, T)) < 0.8).astype(jnp.float32)
    # Exercise the divide_no_nan path: 0/0 must contribute exactly 0.
    forecast = forecast.at[:, :3].set(0.0)
    target = target.at[:, :3].set(0.0)
    insample = jax.random.normal(k4, (B, INS), jnp.float32)
    freq = 1

    loss = smape_loss(insample, freq, forecast, target, mask)
    loss = jax.block_until_ready(loss)
    ref = _smape_ref(forecast, target, mask)
    np.testing.assert_allclose(float(loss), float(ref), rtol=1e-5, atol=1e-6)
    assert np.isfinite(float(loss))

    # --- multi-block "parallel" path + narrow (bf16) inputs ---
    # Force a tiny per-stage budget so the grid has >1 step at test sizes.
    B2, T2 = 64, 128
    f2 = jax.random.normal(k1, (B2, T2), jnp.float32).astype(jnp.bfloat16)
    t2 = jax.random.normal(k2, (B2, T2), jnp.float32).astype(jnp.bfloat16)
    m2 = (jax.random.uniform(k3, (B2, T2)) < 0.5).astype(jnp.float32)
    loss2 = jax.block_until_ready(_smape_pallas(f2, t2, m2, per_stage_bytes=1))
    ref2 = _smape_ref(f2, t2, m2)
    np.testing.assert_allclose(float(loss2), float(ref2), rtol=1e-4, atol=1e-5)

    print("KERNEL_OK")
</pallas_src>

<mosaic_0001>
module attributes {stable_mosaic.version = 11 : i64} {
  func.func @_smape_partial_kernel(%arg0: i32, %arg1: memref<8x128xf32, #tpu.memory_space<vmem>>, %arg2: memref<8x128xf32, #tpu.memory_space<vmem>>, %arg3: memref<8x128xf32, #tpu.memory_space<vmem>>, %arg4: memref<8x128xf32, #tpu.memory_space<vmem>>) attributes {dimension_semantics = [#tpu.dimension_semantics<parallel>], iteration_bounds = array<i64: 1>, scalar_prefetch = 0 : i64, scratch_operands = 0 : i64, tpu.core_type = #tpu.core_type<tc>, window_params = [{transform_indices = @transform_0, window_bounds = array<i64: 8, 128>}, {transform_indices = @transform_1, window_bounds = array<i64: 8, 128>}, {transform_indices = @transform_2, window_bounds = array<i64: 8, 128>}, {transform_indices = @transform_3, window_bounds = array<i64: 8, 128>}]} {
    %c0 = arith.constant 0 : index
    %c0_0 = arith.constant 0 : index
    %0 = vector.load %arg1[%c0, %c0_0] : memref<8x128xf32, #tpu.memory_space<vmem>>, vector<8x128xf32>
    %c0_1 = arith.constant 0 : index
    %c0_2 = arith.constant 0 : index
    %1 = vector.load %arg2[%c0_1, %c0_2] : memref<8x128xf32, #tpu.memory_space<vmem>>, vector<8x128xf32>
    %c0_3 = arith.constant 0 : index
    %c0_4 = arith.constant 0 : index
    %2 = vector.load %arg3[%c0_3, %c0_4] : memref<8x128xf32, #tpu.memory_space<vmem>>, vector<8x128xf32>
    %3 = arith.subf %0, %1 : vector<8x128xf32>
    %4 = math.absf %3 : vector<8x128xf32>
    %5 = math.absf %0 : vector<8x128xf32>
    %6 = math.absf %1 : vector<8x128xf32>
    %7 = arith.addf %5, %6 : vector<8x128xf32>
    %cst = arith.constant 0.000000e+00 : f32
    %8 = vector.broadcast %cst : f32 to vector<8x128xf32>
    %9 = arith.cmpf ogt, %7, %8 : vector<8x128xf32>
    %cst_5 = arith.constant 1.000000e+00 : f32
    %10 = vector.broadcast %cst_5 : f32 to vector<8x128xf32>
    %11 = arith.select %9, %7, %10 : vector<8x128xi1>, vector<8x128xf32>
    %cst_6 = arith.constant 0.000000e+00 : f32
    %12 = vector.broadcast %cst_6 : f32 to vector<8x128xf32>
    %13 = arith.cmpf ogt, %7, %12 : vector<8x128xf32>
    %14 = arith.divf %4, %11 : vector<8x128xf32>
    %cst_7 = arith.constant 0.000000e+00 : f32
    %15 = vector.broadcast %cst_7 : f32 to vector<8x128xf32>
    %16 = arith.select %13, %14, %15 : vector<8x128xi1>, vector<8x128xf32>
    %17 = arith.mulf %16, %2 : vector<8x128xf32>
    %cst_8 = arith.constant dense<0.000000e+00> : vector<128xf32>
    %18 = vector.multi_reduction <add>, %17, %cst_8 [0] : vector<8x128xf32> to vector<128xf32>
    %19 = vector.shape_cast %18 : vector<128xf32> to vector<1x128xf32>
    %20 = vector.shape_cast %19 : vector<1x128xf32> to vector<1x128xf32>
    %21 = vector.broadcast %20 : vector<1x128xf32> to vector<8x128xf32>
    %c0_9 = arith.constant 0 : index
    %c0_10 = arith.constant 0 : index
    %22 = vector.load %arg4[%c0_9, %c0_10] : memref<8x128xf32, #tpu.memory_space<vmem>>, vector<8x128xf32>
    tpu.vector_store %arg4[%c0_9, %c0_10], %21 {strides = array<i32>} : memref<8x128xf32, #tpu.memory_space<vmem>>, vector<8x128xf32>,
    return
  }
  func.func @transform_0(%arg0: i32) -> (i32, i32) {
    %c0_i32 = arith.constant 0 : i32
    %c0_i32_0 = arith.constant 0 : i32
    return %arg0, %c0_i32 : i32, i32
  }
  func.func @transform_1(%arg0: i32) -> (i32, i32) {
    %c0_i32 = arith.constant 0 : i32
    %c0_i32_0 = arith.constant 0 : i32
    return %arg0, %c0_i32 : i32, i32
  }
  func.func @transform_2(%arg0: i32) -> (i32, i32) {
    %c0_i32 = arith.constant 0 : i32
    %c0_i32_0 = arith.constant 0 : i32
    return %arg0, %c0_i32 : i32, i32
  }
  func.func @transform_3(%arg0: i32) -> (i32, i32) {
    %c0_i32 = arith.constant 0 : i32
    %c0_i32_0 = arith.constant 0 : i32
    return %arg0, %c0_i32 : i32, i32
  }
}

</mosaic_0001>

<llo_original>
// kernel: smape_loss.1
$region0: #{smape_loss.1}
  #allocation0 [shape = 'u32[]', space=smem, size = 0x4, offset = 0x4, fixed_abs, tag = 'smem constant byte address 0x4 - core index']
  #allocation1 [shape = 'u32[144,128]{1,0:T(1,128)}', space=vmem, size = 0x12000, scoped, tag = 'internal scratch']
  %s0 = inlined_call_operand.vmem [shape: f32[8,128], index: 0, kind: input, shape index: {}]
  %s1 = inlined_call_operand.vmem [shape: f32[8,128], index: 1, kind: input, shape index: {}]
  %s2 = inlined_call_operand.vmem [shape: f32[8,128], index: 2, kind: input, shape index: {}]
  %s3 = inlined_call_operand.vmem [shape: f32[8,128], index: 3, kind: output, shape index: {}]
  %s4 = sld [smem:[#allocation0]]
  $region22: #{smape_loss.1} parent=0
    _
  %s6 = ssub.s32 1, %s4
  %s7 = scalar_select 0, %s6, %s4
  // Predicated region
  $region2: #{smape_loss.1} parent=0 // pred_check
    _
  $region3: #{smape_loss.1} parent=0 // pred_check_branch
    %9 = sbr.rel (0) target = $region5
  $region4: #{smape_loss.1} parent=0 // pred_region
    _
  $region5: #{smape_loss.1} parent=0 // pred_fallthru
    _
  // Predicated region
  $region6: #{smape_loss.1} parent=0 // pred_check
    _
  $region7: #{smape_loss.1} parent=0 // pred_check_branch
    %11 = sbr.rel (0) target = $region9
  $region8: #{smape_loss.1} parent=0 // pred_region
    _
  $region9: #{smape_loss.1} parent=0 // pred_fallthru
    _
  // Predicated region
  $region10: #{smape_loss.1} parent=0 // pred_check
    _
  $region11: #{smape_loss.1} parent=0 // pred_check_branch
    %13 = sbr.rel (0) target = $region13
  $region12: #{smape_loss.1} parent=0 // pred_region
    _
  $region13: #{smape_loss.1} parent=0 // pred_fallthru
    _
  %v14 = vld [vmem:[%s0] sm:$0xff]
  %v15 = vld [vmem:[%s1] sm:$0xff]
  %v16 = vld [vmem:[%s2] sm:$0xff]
  %v17 = vsub.f32 %v14, %v15
  %v18 = vand.u32 2147483647, %v17
  %v19 = vand.u32 2147483647, %v14
  %v20 = vand.u32 2147483647, %v15
  %v21 = vadd.f32 %v19, %v20
  %vm22 = vcmp.gt.f32.partialorder %v21, 0.0
  %v23 = vsel %vm22, %v21, 1.0
  %v24 = vrcp.pop %v23
  %v25 = vmul.f32 %v18, %v24
  %v26 = vsel %vm22, %v25, 0.0
  %v27 = vmul.f32 %v26, %v16
  %v28 = vrot.slane %v27, 4
  %v29 = vadd.f32 %v27, %v28
  %v30 = vrot.slane %v29, 2
  %v31 = vadd.f32 %v29, %v30
  %v32 = vrot.slane %v31, 1
  %v33 = vadd.f32 %v31, %v32
  %34 = vst [vmem:[%s3] sm:$0xff] %v33
  // Predicated region
  $region14: #{smape_loss.1} parent=0 // pred_check
    _
  $region15: #{smape_loss.1} parent=0 // pred_check_branch
    %36 = sbr.rel (0) target = $region17
  $region16: #{smape_loss.1} parent=0 // pred_region
    _
  $region17: #{smape_loss.1} parent=0 // pred_fallthru
    _
  // Predicated region
  $region18: #{smape_loss.1} parent=0 // pred_check
    _
  $region19: #{smape_loss.1} parent=0 // pred_check_branch
    %38 = sbr.rel (0) target = $region21
  $region20: #{smape_loss.1} parent=0 // pred_region
    _
  $region21: #{smape_loss.1} parent=0 // pred_fallthru
    _

</llo_original>
